<compile_context>
chip_gen: v7x
topology: tpu7x:2x2x1
jax: 0.10.0
libtpu: 0.0.40
codegen_flags: <defaults>
</compile_context>

<pallas_src>
import functools

import jax
import jax.numpy as jnp
import numpy as np
from jax.experimental import pallas as pl
from jax.experimental.pallas import tpu as pltpu


# TODO(synk): perf review suggests moving the mask-weighted sequence reduce
# onto the MXU on v7x (jnp.einsum('bs,bsh->bh', ...) with f32 accumulation) so
# the VPU does not cap the kernel below the 3.2 TB/s roofline. The batched
# mat-vec contraction has not been verified to lower cleanly / to actually
# leave the VALU slot in the bundle dump, so it stays behind this flag; the
# default VPU reduce is correct and HBM-bound on v5e/v6e.
_USE_MXU_REDUCE = False


# ---------------------------------------------------------------------------
# Generation-aware tiling budgets
# ---------------------------------------------------------------------------
@functools.lru_cache(maxsize=1)
def _vmem_capacity_bytes():
    try:
        cap = getattr(pltpu.get_tpu_info(), "vmem_capacity_bytes", None)
        if cap:
            return int(cap)
    except Exception:
        pass
    return 64 * 1024 * 1024                       # conservative (v7x-sized)


@functools.lru_cache(maxsize=1)
def _budgets():
    """Return (hidden-tile byte budget per grid step, vmem_limit_bytes)."""
    cap = _vmem_capacity_bytes()
    if cap >= 100 * 1024 * 1024:                  # v5e / v6e: 128 MiB physical
        return 28 * 1024 * 1024, 80 * 1024 * 1024
    return 10 * 1024 * 1024, 44 * 1024 * 1024     # v7x: 64 MiB physical


def _packed_sublanes(dtype):
    # Packed-sublane tile height: (8,128) f32, (16,128) bf16/f16, (32,128) 8-bit.
    return {4: 8, 2: 16, 1: 32}.get(jnp.dtype(dtype).itemsize, 8)


def _pick_cls_batch_tile(B, sub, max_tb=512):
    """Large batch tile for the cls path; prefer >=2 programs (v7x megacore)."""
    if B % sub != 0:
        return B                                   # whole-extent fallback
    cands = [t for t in range(sub, min(B, max_tb) + 1, sub) if B % t == 0]
    return sorted(cands, key=lambda t: (B // t >= 2, t))[-1]


def _pick_avg_tiles(B, S, H, itemsize, n_hidden, sub, budget):
    """Return (B_pad, TB, S_pad, TS) for the masked-average kernels."""
    # Batch axis: smallest packed-aligned tile => maximum 'parallel' programs.
    if B % sub == 0:
        B_pad, TB = B, sub
    elif B <= 64:
        B_pad, TB = B, B                           # small ragged batch: full extent
    else:
        B_pad, TB = -(-B // sub) * sub, sub        # large ragged batch: pad
    bytes_per_s = max(1, TB * H * itemsize * n_hidden)

    # Sequence (reduction) axis — kept last in the grid, marked "arbitrary".
    if S % 128 == 0:
        S_pad = S
    elif S * bytes_per_s <= budget:
        S_pad = S                                  # small ragged S: one full tile
    else:
        S_pad = -(-S // 128) * 128                 # large ragged S: pad to 128-mult

    if S_pad % 128 == 0:
        max_ts = max(128, (budget // bytes_per_s) // 128 * 128)
        TS, t = 128, 256
        while t <= min(S_pad, max_ts):             # largest in-budget 128-mult divisor
            if S_pad % t == 0:
                TS = t
            t += 128
    else:
        TS = S_pad                                 # whole-extent tile (fits budget)

    # Whole sequence in one tile: grow the batch tile (packed-aligned, still
    # >=2 programs) to amortize the ~0.35us/step pipeline overhead.
    if TS == S_pad and B_pad % sub == 0:
        per_row = S_pad * H * itemsize * n_hidden
        cap = min(B_pad // 2, 128, max(sub, budget // max(1, per_row)))
        best, t = TB, sub
        while t <= cap:
            if B_pad % t == 0:
                best = t
            t += sub
        TB = max(TB, best)
    return B_pad, TB, S_pad, TS


def _pad_bs(x, B_pad, S_pad):
    B, S = x.shape[0], x.shape[1]
    if B_pad == B and S_pad == S:
        return x
    pad = [(0, B_pad - B), (0, S_pad - S)] + [(0, 0)] * (x.ndim - 2)
    return jnp.pad(x, pad)


# ---------------------------------------------------------------------------
# Kernels
# ---------------------------------------------------------------------------
def _cls_flat_kernel(flat_ref, out_ref):
    # flat_ref block is exactly the token-0 hidden state of TB rows.
    out_ref[...] = flat_ref[...]


def _cls_slab_kernel(hidden_ref, out_ref):
    # Fallback when H is not lane-aligned: minimal 8-row sequence slab, take row 0.
    out_ref[...] = hidden_ref[:, 0, :]


def _make_masked_avg_kernel(n_hidden, scale, use_mxu, approx_recip):
    def kernel(*refs):
        mask_ref = refs[0]
        hidden_refs = refs[1:1 + n_hidden]
        out_ref = refs[1 + n_hidden]
        num_acc, den_acc = refs[2 + n_hidden:]
        s = pl.program_id(1)

        @pl.when(s == 0)
        def _():
            num_acc[...] = jnp.zeros_like(num_acc)
            den_acc[...] = jnp.zeros_like(den_acc)

        mask_f32 = mask_ref[...]                                  # (TB, TS) f32
        den_acc[...] += jnp.sum(mask_f32, axis=1, keepdims=True)  # (TB, 1)

        if use_mxu:
            # TODO(synk): gated v7x path (see _USE_MXU_REDUCE above).
            m = mask_f32.astype(hidden_refs[0].dtype)             # exact for 0/1
            for h_ref in hidden_refs:
                num_acc[...] += jnp.einsum(
                    "bs,bsh->bh", m, h_ref[...],
                    preferred_element_type=jnp.float32)
        else:
            m = mask_f32[:, :, None]                              # (TB, TS, 1)
            for h_ref in hidden_refs:
                num_acc[...] += jnp.sum(
                    h_ref[...].astype(jnp.float32) * m, axis=1)   # (TB, H)

        @pl.when(s == pl.num_programs(1) - 1)
        def _():
            inv = pl.reciprocal(den_acc[...], approx=approx_recip)
            if scale != 1.0:
                inv = inv * jnp.float32(scale)     # fold /2 of the 2-layer average
            out_ref[...] = (num_acc[...] * inv).astype(out_ref.dtype)

    return kernel


# ---------------------------------------------------------------------------
# Wrappers
# ---------------------------------------------------------------------------
def _cls_pool(last_hidden):
    B, S, H = last_hidden.shape
    dtype = last_hidden.dtype
    sub = _packed_sublanes(dtype)
    _, vmem_limit = _budgets()
    TB = _pick_cls_batch_tile(B, sub)
    cparams = pltpu.CompilerParams(dimension_semantics=("parallel",),
                                   vmem_limit_bytes=vmem_limit)

    if H % 128 == 0:
        # Free reshape for a contiguous (B, S, H) array; the (TB, H) block at
        # column-block 0 DMAs exactly the token-0 hidden state of each row.
        flat = last_hidden.reshape(B, S * H)
        return pl.pallas_call(
            _cls_flat_kernel,
            out_shape=jax.ShapeDtypeStruct((B, H), dtype),
            grid=(B // TB,),
            in_specs=[pl.BlockSpec((TB, H), lambda i: (i, 0))],
            out_specs=pl.BlockSpec((TB, H), lambda i: (i, 0)),
            compiler_params=cparams,
        )(flat)

    # H not a multiple of 128: DMA only a minimal 8-row sequence slab.
    TS0 = 8 if S >= 8 else S
    return pl.pallas_call(
        _cls_slab_kernel,
        out_shape=jax.ShapeDtypeStruct((B, H), dtype),
        grid=(B // TB,),
        in_specs=[pl.BlockSpec((TB, TS0, H), lambda i: (i, 0, 0))],
        out_specs=pl.BlockSpec((TB, H), lambda i: (i, 0)),
        compiler_params=cparams,
    )(last_hidden)


def _masked_avg_pool(attention_mask, hiddens, scale):
    n_hidden = len(hiddens)
    B, S, H = hiddens[0].shape
    dtype = hiddens[0].dtype
    itemsize = jnp.dtype(dtype).itemsize
    sub = _packed_sublanes(dtype)
    budget, vmem_limit = _budgets()

    B_pad, TB, S_pad, TS = _pick_avg_tiles(B, S, H, itemsize, n_hidden, sub, budget)

    mask = _pad_bs(attention_mask.astype(jnp.float32), B_pad, S_pad)
    hiddens = [_pad_bs(h, B_pad, S_pad) for h in hiddens]

    use_mxu = _USE_MXU_REDUCE and itemsize < 4
    approx = itemsize < 4                 # bf16/f16 outputs: approx recip on the EUP
    kernel = _make_masked_avg_kernel(n_hidden, scale, use_mxu, approx)

    in_specs = [pl.BlockSpec((TB, TS), lambda i, s: (i, s))]
    in_specs += [pl.BlockSpec((TB, TS, H), lambda i, s: (i, s, 0))] * n_hidden

    out = pl.pallas_call(
        kernel,
        out_shape=jax.ShapeDtypeStruct((B_pad, H), dtype),
        grid=(B_pad // TB, S_pad // TS),
        in_specs=in_specs,
        out_specs=pl.BlockSpec((TB, H), lambda i, s: (i, 0)),
        scratch_shapes=[
            pltpu.VMEM((TB, H), jnp.float32),     # numerator accumulator
            pltpu.VMEM((TB, 1), jnp.float32),     # mask-sum accumulator
        ],
        compiler_params=pltpu.CompilerParams(
            dimension_semantics=("parallel", "arbitrary"),
            vmem_limit_bytes=vmem_limit),
    )(mask, *hiddens)
    return out[:B] if B_pad != B else out


def pooler_forward(pooler_type, attention_mask, last_hidden, hidden_states=None):
    """JAX/Pallas equivalent of Pooler.forward.

    attention_mask: (B, S) float/int (1 = keep token, 0 = pad)
    last_hidden:    (B, S, H)
    hidden_states:  tuple/list of (B, S, H) arrays, HF-style indexing
                    (hidden_states[0] = embeddings, [1] = first layer, [-1] = last)
    """
    assert pooler_type in ['cls', 'cls_before_pooler', 'avg',
                           'avg_top2', 'avg_first_last'], \
        f'unrecognized pooling type {pooler_type}'

    if pooler_type in ('cls', 'cls_before_pooler'):
        return _cls_pool(last_hidden)
    elif pooler_type == 'avg':
        return _masked_avg_pool(attention_mask, [last_hidden], scale=1.0)
    elif pooler_type == 'avg_first_last':
        return _masked_avg_pool(attention_mask,
                                [hidden_states[1], hidden_states[-1]], scale=0.5)
    elif pooler_type == 'avg_top2':
        return _masked_avg_pool(attention_mask,
                                [hidden_states[-2], hidden_states[-1]], scale=0.5)
    else:
        raise NotImplementedError


# ---------------------------------------------------------------------------
# Self-test
# ---------------------------------------------------------------------------
if __name__ == "__main__":
    def ref_avg(mask, h):
        return (h * mask[:, :, None]).sum(1) / mask.sum(-1)[:, None]

    key = jax.random.PRNGKey(0)
    k_hs, k_hs2 = jax.random.split(key)

    # ---- small f32 test (ragged, unaligned shapes) ----
    B, S, H = 2, 8, 32
    n_layers = 4  # hidden_states has n_layers+1 entries (embeddings + layers)
    hidden_states = tuple(
        jax.random.normal(jax.random.fold_in(k_hs, i), (B, S, H), dtype=jnp.float32)
        for i in range(n_layers + 1))
    last_hidden = hidden_states[-1]
    lengths = jnp.array([S, S // 2], dtype=jnp.int32)
    attention_mask = (jnp.arange(S)[None, :] < lengths[:, None]).astype(jnp.float32)

    results = {
        'cls': pooler_forward('cls', attention_mask, last_hidden),
        'cls_before_pooler': pooler_forward('cls_before_pooler',
                                            attention_mask, last_hidden),
        'avg': pooler_forward('avg', attention_mask, last_hidden),
        'avg_first_last': pooler_forward('avg_first_last', attention_mask,
                                         last_hidden, hidden_states),
        'avg_top2': pooler_forward('avg_top2', attention_mask,
                                   last_hidden, hidden_states),
    }
    for v in results.values():
        jax.block_until_ready(v)

    np.testing.assert_allclose(np.asarray(results['cls']),
                               np.asarray(last_hidden[:, 0]), rtol=1e-6, atol=1e-6)
    np.testing.assert_allclose(np.asarray(results['cls_before_pooler']),
                               np.asarray(last_hidden[:, 0]), rtol=1e-6, atol=1e-6)
    np.testing.assert_allclose(np.asarray(results['avg']),
                               np.asarray(ref_avg(attention_mask, last_hidden)),
                               rtol=1e-5, atol=1e-5)
    np.testing.assert_allclose(
        np.asarray(results['avg_first_last']),
        np.asarray(ref_avg(attention_mask,
                           (hidden_states[1] + hidden_states[-1]) / 2.0)),
        rtol=1e-5, atol=1e-5)
    np.testing.assert_allclose(
        np.asarray(results['avg_top2']),
        np.asarray(ref_avg(attention_mask,
                           (hidden_states[-2] + hidden_states[-1]) / 2.0)),
        rtol=1e-5, atol=1e-5)

    # ---- lane-aligned bf16 test (exercises the flat cls path + packed tiling) ----
    B2, S2, H2 = 16, 128, 128
    last_hidden_bf16 = jax.random.normal(k_hs2, (B2, S2, H2), dtype=jnp.bfloat16)
    lengths2 = 1 + (jnp.arange(B2, dtype=jnp.int32) * 37) % S2
    mask2 = (jnp.arange(S2)[None, :] < lengths2[:, None]).astype(jnp.float32)

    cls2 = pooler_forward('cls', mask2, last_hidden_bf16)
    avg2 = pooler_forward('avg', mask2, last_hidden_bf16)
    jax.block_until_ready(cls2)
    jax.block_until_ready(avg2)

    np.testing.assert_allclose(np.asarray(cls2, dtype=np.float32),
                               np.asarray(last_hidden_bf16[:, 0], dtype=np.float32),
                               rtol=0, atol=0)
    np.testing.assert_allclose(
        np.asarray(avg2, dtype=np.float32),
        np.asarray(ref_avg(mask2, last_hidden_bf16.astype(jnp.float32))),
        rtol=2e-2, atol=2e-2)

    print("KERNEL_OK")
</pallas_src>

<mosaic_0001>
module attributes {stable_mosaic.version = 11 : i64} {
  func.func @_cls_slab_kernel(%arg0: i32, %arg1: memref<2x8x32xf32, #tpu.memory_space<vmem>>, %arg2: memref<2x32xf32, #tpu.memory_space<vmem>>) attributes {dimension_semantics = [#tpu.dimension_semantics<parallel>], iteration_bounds = array<i64: 1>, scalar_prefetch = 0 : i64, scratch_operands = 0 : i64, tpu.core_type = #tpu.core_type<tc>, window_params = [{transform_indices = @transform_0, window_bounds = array<i64: 2, 8, 32>}, {transform_indices = @transform_1, window_bounds = array<i64: 2, 32>}]} {
    %c0 = arith.constant 0 : index
    %c0_0 = arith.constant 0 : index
    %c0_1 = arith.constant 0 : index
    %0 = vector.load %arg1[%c0, %c0_0, %c0_1] : memref<2x8x32xf32, #tpu.memory_space<vmem>>, vector<2x1x32xf32>
    %1 = vector.shape_cast %0 : vector<2x1x32xf32> to vector<2x32xf32>
    %c0_2 = arith.constant 0 : index
    %c0_3 = arith.constant 0 : index
    %2 = vector.load %arg2[%c0_2, %c0_3] : memref<2x32xf32, #tpu.memory_space<vmem>>, vector<2x32xf32>
    tpu.vector_store %arg2[%c0_2, %c0_3], %1 {strides = array<i32>} : memref<2x32xf32, #tpu.memory_space<vmem>>, vector<2x32xf32>,
    return
  }
  func.func @transform_0(%arg0: i32) -> (i32, i32, i32) {
    %c0_i32 = arith.constant 0 : i32
    %c0_i32_0 = arith.constant 0 : i32
    %c0_i32_1 = arith.constant 0 : i32
    return %arg0, %c0_i32, %c0_i32_0 : i32, i32, i32
  }
  func.func @transform_1(%arg0: i32) -> (i32, i32) {
    %c0_i32 = arith.constant 0 : i32
    %c0_i32_0 = arith.constant 0 : i32
    return %arg0, %c0_i32 : i32, i32
  }
}

</mosaic_0001>

<llo_original>
// kernel: tpu_custom_call.1
$region0: #{tpu_custom_call.1}
  #allocation0 [shape = 'u32[]', space=smem, size = 0x4, offset = 0x4, fixed_abs, tag = 'smem constant byte address 0x4 - core index']
  #allocation1 [shape = 'u32[144,128]{1,0:T(1,128)}', space=vmem, size = 0x12000, scoped, tag = 'internal scratch']
  %s0 = inlined_call_operand.hbm [shape: f32[2,8,32], index: 0, kind: input, shape index: {}]
  %s1 = inlined_call_operand.hbm [shape: f32[2,32], index: 1, kind: output, shape index: {}]
  %s2 = sld [smem:[#allocation0]]
  $region18: #{tpu_custom_call.1} parent=0
    _
  %s4 = ssub.s32 1, %s2
  %s5 = scalar_select 0, %s4, %s2
  $region1: #{tpu_custom_call.1} parent=0
    #allocation2 [shape = 'u8[8192]{0}', space=vmem, size = 0x2000, scoped, tag = 'input window, operand 0, single buffered']
    #allocation3 [shape = 's32[1]{0}', space=sflag, size = 0x4, scoped, tag = 'scoped memory for tpu_custom_call.1']
    #allocation4 [shape = 's32[1]{0}', space=sflag, size = 0x4, scoped, tag = 'scoped memory for tpu_custom_call.1']
    #allocation5 [shape = 'u8[1024]{0}', space=vmem, size = 0x400, scoped, tag = 'output window, operand 0, single buffered']
    %6 = vsyncpa [#allocation3], 0
    %7 = vsyncpa [#allocation4], 0
    // Predicated region
    $region2: #{tpu_custom_call.1} parent=1 // pred_check
      _
    $region3: #{tpu_custom_call.1} parent=1 // pred_check_branch
      %9 = sbr.rel (0) target = $region5
    $region4: #{tpu_custom_call.1} parent=1 // pred_region
      %s11 = ssub.s32 256, 256
      %12 = vsyncadd [#allocation3], %s11
      %s13 = sshll.u32 [#allocation2], 4
      %s14 = int_to_ptr.vmem [resolvable:$true] %s13
      %19 = dma.hbm_to_vmem [thread:$0]  %s0, 256, %s14, [#allocation3], 128, 128, 8
    $region5: #{tpu_custom_call.1} parent=1 // pred_fallthru
      _
    // Predicated region
    $region6: #{tpu_custom_call.1} parent=1 // pred_check
      _
    $region7: #{tpu_custom_call.1} parent=1 // pred_check_branch
      %21 = sbr.rel (0) target = $region9
    $region8: #{tpu_custom_call.1} parent=1 // pred_region
      %22 = dma.done [#allocation3], 256
    $region9: #{tpu_custom_call.1} parent=1 // pred_fallthru
      _
    %v23 = vld [vmem:[#allocation2] sm:$0x1]
    %v24 = vld [vmem:[#allocation2 + $0x8] sm:$0x1]
    %v27 = vrot.slane %v24, 7
    %vm28 = vcmask 1041409
    %v29 = vsel %vm28, %v27, %v23
    %vm31 = vcmask 254976
    %32 = vst.msk [vmem:[#allocation5] sm:$0x3] %vm31, %v29
    // Predicated region
    $region10: #{tpu_custom_call.1} parent=1 // pred_check
      _
    $region11: #{tpu_custom_call.1} parent=1 // pred_check_branch
      %34 = sbr.rel (0) target = $region13
    $region12: #{tpu_custom_call.1} parent=1 // pred_region
      %s36 = ssub.s32 32, 32
      %37 = vsyncadd [#allocation4], %s36
      %s39 = sshll.u32 [#allocation5], 4
      %s40 = int_to_ptr.vmem [resolvable:$true] %s39
      %42 = dma.vmem_to_hbm [thread:$0]  %s40, 32, %s1, [#allocation4]
    $region13: #{tpu_custom_call.1} parent=1 // pred_fallthru
      _
    // Predicated region
    $region14: #{tpu_custom_call.1} parent=1 // pred_check
      _
    $region15: #{tpu_custom_call.1} parent=1 // pred_check_branch
      %44 = sbr.rel (0) target = $region17
    $region16: #{tpu_custom_call.1} parent=1 // pred_region
      %45 = dma.done [#allocation4], 32
    $region17: #{tpu_custom_call.1} parent=1 // pred_fallthru
      _
    %46 = vsyncpa [#allocation3], 1
    %47 = vsyncpa [#allocation4], 1

</llo_original>
